<compile_context>
chip_gen: v7x
topology: tpu7x:2x2x1
jax: 0.10.0
libtpu: 0.0.40
codegen_flags: <defaults>
</compile_context>

<pallas_src>
import math

import jax
import jax.numpy as jnp
from jax import lax
from jax.experimental import pallas as pl
from jax.experimental.pallas import tpu as pltpu


def _round_up(x, m):
    return ((x + m - 1) // m) * m


def ffn_kernel(x_ref, w1_ref, b1_ref, w2_ref, b2_ref, o_ref, acc_ref):
    # x_ref:  (tm, d_model)
    # w1_ref: (tf, d_model)      -- PyTorch layout (rows of W1)
    # b1_ref: (1, tf)
    # w2_ref: (d_model, tf)      -- PyTorch layout (columns of W2)
    # b2_ref: (1, d_model)
    # o_ref:  (tm, d_model)
    # acc_ref:(tm, d_model) f32 scratch, persists across the d_ff grid axis.
    f = pl.program_id(1)

    @pl.when(f == 0)
    def _():
        acc_ref[...] = jnp.zeros_like(acc_ref)

    # h_chunk = relu(x @ W1_chunk^T + b1_chunk)             : (tm, tf)
    h = lax.dot_general(
        x_ref[...], w1_ref[...],
        dimension_numbers=(((1,), (1,)), ((), ())),
        preferred_element_type=jnp.float32,
    )
    h = jnp.maximum(h + b1_ref[...], 0.0)
    # Dropout (eval mode) == identity.

    # acc += h_chunk @ W2_chunk^T                           : (tm, d_model)
    acc_ref[...] += lax.dot_general(
        h.astype(w2_ref.dtype), w2_ref[...],
        dimension_numbers=(((1,), (1,)), ((), ())),
        preferred_element_type=jnp.float32,
    )

    @pl.when(f == pl.num_programs(1) - 1)
    def _():
        o_ref[...] = (acc_ref[...] + b2_ref[...]).astype(o_ref.dtype)


def positionwise_feed_forward(x, w1, b1, w2, b2, *, tm=256, tf=512):
    """Fused position-wise FFN (eval mode).

    x:  [..., d_model]
    w1: [d_ff, d_model], b1: [d_ff]     (nn.Linear(d_model, d_ff))
    w2: [d_model, d_ff], b2: [d_model]  (nn.Linear(d_ff, d_model))
    tm: row tile (256 good on v6e/v7x; 128 is a good choice on v5e)
    tf: d_ff streaming tile (multiple of 128 when smaller than d_ff)
    """
    orig_shape = x.shape
    d_model = x.shape[-1]
    d_ff = w1.shape[0]
    M = math.prod(orig_shape[:-1])

    x2d = x.reshape(M, d_model)

    # --- row tiling: large tile, multiple of 16 (bf16 packing); pad M if ragged.
    tm = _round_up(min(tm, _round_up(M, 16)), 16)
    M_pad = _round_up(M, tm)
    if M_pad != M:
        x2d = jnp.pad(x2d, ((0, M_pad - M), (0, 0)))

    # --- d_ff streaming tile: full d_ff if it fits, else a multiple of 128.
    #     Zero-padded d_ff columns contribute exactly 0 to the output.
    tf = min(tf, d_ff)
    if tf < d_ff and tf % 128 != 0:
        tf = _round_up(tf, 128)
    d_ff_pad = _round_up(d_ff, tf)
    if d_ff_pad != d_ff:
        pad_f = d_ff_pad - d_ff
        w1 = jnp.pad(w1, ((0, pad_f), (0, 0)))
        b1 = jnp.pad(b1, ((0, pad_f),))
        w2 = jnp.pad(w2, ((0, 0), (0, pad_f)))

    b1_2d = b1.reshape(1, d_ff_pad)
    b2_2d = b2.reshape(1, d_model)

    grid = (M_pad // tm, d_ff_pad // tf)

    # VMEM budget: double-buffered tiles + the f32 accumulator, with headroom.
    itemsize = jnp.dtype(x.dtype).itemsize
    tile_bytes = 2 * itemsize * (tm * d_model + tf * d_model + tf
                                 + d_model * tf + d_model + tm * d_model)
    tile_bytes += 4 * tm * d_model
    vmem_limit = min(max(int(1.5 * tile_bytes) + (4 << 20), 32 << 20), 64 << 20)

    flops = 2 * 2 * M * d_model * d_ff  # two matmuls
    bytes_accessed = int(itemsize) * (x2d.size + w1.size + b1.size
                                      + w2.size + b2.size + M_pad * d_model)

    out2d = pl.pallas_call(
        ffn_kernel,
        out_shape=jax.ShapeDtypeStruct((M_pad, d_model), x.dtype),
        grid_spec=pltpu.PrefetchScalarGridSpec(
            num_scalar_prefetch=0,
            grid=grid,
            in_specs=[
                pl.BlockSpec((tm, d_model), lambda i, f: (i, 0)),   # x rows
                pl.BlockSpec((tf, d_model), lambda i, f: (f, 0)),   # W1 chunk
                pl.BlockSpec((1, tf), lambda i, f: (0, f)),         # b1 chunk
                pl.BlockSpec((d_model, tf), lambda i, f: (0, f)),   # W2 chunk
                pl.BlockSpec((1, d_model), lambda i, f: (0, 0)),    # b2
            ],
            out_specs=pl.BlockSpec((tm, d_model), lambda i, f: (i, 0)),
            scratch_shapes=[pltpu.VMEM((tm, d_model), jnp.float32)],
        ),
        compiler_params=pltpu.CompilerParams(
            dimension_semantics=("parallel", "arbitrary"),
            vmem_limit_bytes=vmem_limit),
        cost_estimate=pl.CostEstimate(
            flops=flops, transcendentals=0, bytes_accessed=bytes_accessed),
    )(x2d, w1, b1_2d, w2, b2_2d)

    if M_pad != M:
        out2d = out2d[:M]
    return out2d.reshape(orig_shape)


def _init_linear(key, out_features, in_features, dtype=jnp.float32):
    # Deterministic init mimicking nn.Linear defaults (uniform +/- 1/sqrt(fan_in)).
    kw, kb = jax.random.split(key)
    bound = 1.0 / (in_features ** 0.5)
    w = jax.random.uniform(kw, (out_features, in_features), dtype,
                           minval=-bound, maxval=bound)
    b = jax.random.uniform(kb, (out_features,), dtype,
                           minval=-bound, maxval=bound)
    return w, b


def _ref_ffn(x, w1, b1, w2, b2):
    h = jnp.maximum(jnp.einsum("...d,fd->...f", x, w1) + b1, 0.0)
    return jnp.einsum("...f,df->...d", h, w2) + b2


if __name__ == "__main__":
    key = jax.random.PRNGKey(0)
    k_x, k_w1, k_w2, k_x2 = jax.random.split(key, 4)

    batch, seq, d_model, d_ff = 2, 8, 32, 64
    x = jax.random.normal(k_x, (batch, seq, d_model), jnp.float32)
    w1, b1 = _init_linear(k_w1, d_ff, d_model)     # nn.Linear(d_model, d_ff)
    w2, b2 = _init_linear(k_w2, d_model, d_ff)     # nn.Linear(d_ff, d_model)

    # f32 path.
    out = jax.block_until_ready(positionwise_feed_forward(x, w1, b1, w2, b2))
    ref = _ref_ffn(x, w1, b1, w2, b2)
    assert out.shape == (batch, seq, d_model)
    assert jnp.allclose(out, ref, atol=1e-4, rtol=1e-4), \
        float(jnp.max(jnp.abs(out - ref)))

    # bf16 path (also exercises the ragged-M padding: M = 3*5 = 15 -> 16 rows).
    xb = jax.random.normal(k_x2, (3, 5, d_model), jnp.float32).astype(jnp.bfloat16)
    w1b = w1.astype(jnp.bfloat16); b1b = b1.astype(jnp.bfloat16)
    w2b = w2.astype(jnp.bfloat16); b2b = b2.astype(jnp.bfloat16)
    outb = jax.block_until_ready(
        positionwise_feed_forward(xb, w1b, b1b, w2b, b2b))
    refb = _ref_ffn(xb.astype(jnp.float32), w1b.astype(jnp.float32),
                    b1b.astype(jnp.float32), w2b.astype(jnp.float32),
                    b2b.astype(jnp.float32))
    assert outb.shape == (3, 5, d_model)
    assert jnp.allclose(outb.astype(jnp.float32), refb, atol=5e-2, rtol=5e-2), \
        float(jnp.max(jnp.abs(outb.astype(jnp.float32) - refb)))

    print("KERNEL_OK")
</pallas_src>

<mosaic_0001>
module attributes {stable_mosaic.version = 11 : i64} {
  func.func @ffn_kernel(%arg0: i32, %arg1: i32, %arg2: memref<16x32xf32, #tpu.memory_space<vmem>>, %arg3: memref<64x32xf32, #tpu.memory_space<vmem>>, %arg4: memref<1x64xf32, #tpu.memory_space<vmem>>, %arg5: memref<32x64xf32, #tpu.memory_space<vmem>>, %arg6: memref<1x32xf32, #tpu.memory_space<vmem>>, %arg7: memref<16x32xf32, #tpu.memory_space<vmem>>, %arg8: memref<16x32xf32, #tpu.memory_space<vmem>>) attributes {dimension_semantics = [#tpu.dimension_semantics<parallel>, #tpu.dimension_semantics<arbitrary>], iteration_bounds = array<i64: 1, 1>, scalar_prefetch = 0 : i64, scratch_operands = 1 : i64, tpu.core_type = #tpu.core_type<tc>, window_params = [{transform_indices = @transform_0, window_bounds = array<i64: 16, 32>}, {transform_indices = @transform_1, window_bounds = array<i64: 64, 32>}, {transform_indices = @transform_2, window_bounds = array<i64: 1, 64>}, {transform_indices = @transform_3, window_bounds = array<i64: 32, 64>}, {pipeline_mode = #tpu.pipeline_mode<synchronous>, transform_indices = @transform_4, window_bounds = array<i64: 1, 32>}, {transform_indices = @transform_5, window_bounds = array<i64: 16, 32>}]} {
    %c0_i32 = arith.constant 0 : i32
    %0 = arith.cmpi eq, %arg1, %c0_i32 : i32
    %1 = arith.extui %0 : i1 to i32
    %c0_i32_0 = arith.constant 0 : i32
    %2 = arith.cmpi ne, %1, %c0_i32_0 : i32
    scf.if %2 {
      %cst_16 = arith.constant 0.000000e+00 : f32
      %19 = vector.broadcast %cst_16 : f32 to vector<16x32xf32>
      %c0_17 = arith.constant 0 : index
      %c0_18 = arith.constant 0 : index
      %20 = vector.load %arg8[%c0_17, %c0_18] : memref<16x32xf32, #tpu.memory_space<vmem>>, vector<16x32xf32>
      tpu.vector_store %arg8[%c0_17, %c0_18], %19 {strides = array<i32>} : memref<16x32xf32, #tpu.memory_space<vmem>>, vector<16x32xf32>,
    } else {
    }
    %c0 = arith.constant 0 : index
    %c0_1 = arith.constant 0 : index
    %3 = vector.load %arg2[%c0, %c0_1] : memref<16x32xf32, #tpu.memory_space<vmem>>, vector<16x32xf32>
    %c0_2 = arith.constant 0 : index
    %c0_3 = arith.constant 0 : index
    %4 = vector.load %arg3[%c0_2, %c0_3] : memref<64x32xf32, #tpu.memory_space<vmem>>, vector<64x32xf32>
    %cst = arith.constant dense<0.000000e+00> : vector<16x64xf32>
    %5 = tpu.matmul %3, %4, %cst {dimension_numbers = #tpu.dot_dimension_numbers<[1], [1], [0], [0], [0, 0, 1, 0], [], []>} : vector<16x32xf32>, vector<64x32xf32>, vector<16x64xf32> -> vector<16x64xf32>
    %c0_4 = arith.constant 0 : index
    %c0_5 = arith.constant 0 : index
    %6 = vector.load %arg4[%c0_4, %c0_5] : memref<1x64xf32, #tpu.memory_space<vmem>>, vector<1x64xf32>
    %7 = vector.broadcast %6 : vector<1x64xf32> to vector<16x64xf32>
    %8 = arith.addf %5, %7 : vector<16x64xf32>
    %cst_6 = arith.constant 0.000000e+00 : f32
    %9 = vector.broadcast %cst_6 : f32 to vector<16x64xf32>
    %10 = arith.maximumf %8, %9 : vector<16x64xf32>
    %c0_7 = arith.constant 0 : index
    %c0_8 = arith.constant 0 : index
    %11 = vector.load %arg8[%c0_7, %c0_8] : memref<16x32xf32, #tpu.memory_space<vmem>>, vector<16x32xf32>
    %c0_9 = arith.constant 0 : index
    %c0_10 = arith.constant 0 : index
    %12 = vector.load %arg5[%c0_9, %c0_10] : memref<32x64xf32, #tpu.memory_space<vmem>>, vector<32x64xf32>
    %cst_11 = arith.constant dense<0.000000e+00> : vector<16x32xf32>
    %13 = tpu.matmul %10, %12, %cst_11 {dimension_numbers = #tpu.dot_dimension_numbers<[1], [1], [0], [0], [0, 0, 1, 0], [], []>} : vector<16x64xf32>, vector<32x64xf32>, vector<16x32xf32> -> vector<16x32xf32>
    %14 = arith.addf %11, %13 : vector<16x32xf32>
    %c0_12 = arith.constant 0 : index
    %c0_13 = arith.constant 0 : index
    %15 = vector.load %arg8[%c0_12, %c0_13] : memref<16x32xf32, #tpu.memory_space<vmem>>, vector<16x32xf32>
    tpu.vector_store %arg8[%c0_12, %c0_13], %14 {strides = array<i32>} : memref<16x32xf32, #tpu.memory_space<vmem>>, vector<16x32xf32>,
    %c0_i32_14 = arith.constant 0 : i32
    %16 = arith.cmpi eq, %arg1, %c0_i32_14 : i32
    %17 = arith.extui %16 : i1 to i32
    %c0_i32_15 = arith.constant 0 : i32
    %18 = arith.cmpi ne, %17, %c0_i32_15 : i32
    scf.if %18 {
      %c0_16 = arith.constant 0 : index
      %c0_17 = arith.constant 0 : index
      %19 = vector.load %arg8[%c0_16, %c0_17] : memref<16x32xf32, #tpu.memory_space<vmem>>, vector<16x32xf32>
      %c0_18 = arith.constant 0 : index
      %c0_19 = arith.constant 0 : index
      %20 = vector.load %arg6[%c0_18, %c0_19] : memref<1x32xf32, #tpu.memory_space<vmem>>, vector<1x32xf32>
      %21 = vector.broadcast %20 : vector<1x32xf32> to vector<16x32xf32>
      %22 = arith.addf %19, %21 : vector<16x32xf32>
      %c0_20 = arith.constant 0 : index
      %c0_21 = arith.constant 0 : index
      %23 = vector.load %arg7[%c0_20, %c0_21] : memref<16x32xf32, #tpu.memory_space<vmem>>, vector<16x32xf32>
      tpu.vector_store %arg7[%c0_20, %c0_21], %22 {strides = array<i32>} : memref<16x32xf32, #tpu.memory_space<vmem>>, vector<16x32xf32>,
    } else {
    }
    return
  }
  func.func @transform_0(%arg0: i32, %arg1: i32) -> (i32, i32) {
    %c0_i32 = arith.constant 0 : i32
    %c0_i32_0 = arith.constant 0 : i32
    return %arg0, %c0_i32 : i32, i32
  }
  func.func @transform_1(%arg0: i32, %arg1: i32) -> (i32, i32) {
    %c0_i32 = arith.constant 0 : i32
    %c0_i32_0 = arith.constant 0 : i32
    return %arg1, %c0_i32 : i32, i32
  }
  func.func @transform_2(%arg0: i32, %arg1: i32) -> (i32, i32) {
    %c0_i32 = arith.constant 0 : i32
    %c0_i32_0 = arith.constant 0 : i32
    return %c0_i32, %arg1 : i32, i32
  }
  func.func @transform_3(%arg0: i32, %arg1: i32) -> (i32, i32) {
    %c0_i32 = arith.constant 0 : i32
    %c0_i32_0 = arith.constant 0 : i32
    return %c0_i32, %arg1 : i32, i32
  }
  func.func @transform_4(%arg0: i32, %arg1: i32) -> (i32, i32) {
    %c0_i32 = arith.constant 0 : i32
    %c0_i32_0 = arith.constant 0 : i32
    %c0_i32_1 = arith.constant 0 : i32
    return %c0_i32, %c0_i32_0 : i32, i32
  }
  func.func @transform_5(%arg0: i32, %arg1: i32) -> (i32, i32) {
    %c0_i32 = arith.constant 0 : i32
    %c0_i32_0 = arith.constant 0 : i32
    return %arg0, %c0_i32 : i32, i32
  }
}

</mosaic_0001>

<llo_original>
// kernel: tpu_custom_call.1
$region0: #{tpu_custom_call.1}
  #allocation0 [shape = 'u32[]', space=smem, size = 0x4, offset = 0x4, fixed_abs, tag = 'smem constant byte address 0x4 - core index']
  #allocation1 [shape = 'u32[144,128]{1,0:T(1,128)}', space=vmem, size = 0x12000, scoped, tag = 'internal scratch']
  #allocation2 [shape = 'f32[16,32]{1,0:T(8,128)}', space=vmem, size = 0x2000, scoped, tag = 'scratch operand']
  %s0 = inlined_call_operand.vmem [shape: f32[16,32], index: 0, kind: input, shape index: {}]
  %s1 = inlined_call_operand.vmem [shape: f32[64,32], index: 1, kind: input, shape index: {}]
  %s2 = inlined_call_operand.vmem [shape: f32[1,64], index: 2, kind: input, shape index: {}]
  %s3 = inlined_call_operand.vmem [shape: f32[32,64], index: 3, kind: input, shape index: {}]
  %s4 = inlined_call_operand.vmem [shape: f32[1,32], index: 4, kind: input, shape index: {}]
  %s5 = inlined_call_operand.hbm [shape: f32[16,32], index: 5, kind: output, shape index: {}]
  %s6 = sld [smem:[#allocation0]]
  $region38: #{tpu_custom_call.1} parent=0
    _
  %s8 = ssub.s32 1, %s6
  %s9 = scalar_select 0, %s8, %s6
  $region1: #{tpu_custom_call.1} parent=0
    #allocation3 [shape = 'u8[8192]{0}', space=vmem, size = 0x2000, scoped, tag = 'output window, operand 0, single buffered']
    #allocation4 [shape = 's32[1]{0}', space=sflag, size = 0x4, scoped, tag = 'scoped memory for tpu_custom_call.1']
    %10 = vsyncpa [#allocation4], 0
    // Predicated region
    $region2: #{tpu_custom_call.1} parent=1 // pred_check
      _
    $region3: #{tpu_custom_call.1} parent=1 // pred_check_branch
      %12 = sbr.rel (0) target = $region5
    $region4: #{tpu_custom_call.1} parent=1 // pred_region
      _
    $region5: #{tpu_custom_call.1} parent=1 // pred_fallthru
      _
    // Predicated region
    $region6: #{tpu_custom_call.1} parent=1 // pred_check
      _
    $region7: #{tpu_custom_call.1} parent=1 // pred_check_branch
      %14 = sbr.rel (0) target = $region9
    $region8: #{tpu_custom_call.1} parent=1 // pred_region
      _
    $region9: #{tpu_custom_call.1} parent=1 // pred_fallthru
      _
    // Predicated region
    $region10: #{tpu_custom_call.1} parent=1 // pred_check
      _
    $region11: #{tpu_custom_call.1} parent=1 // pred_check_branch
      %16 = sbr.rel (0) target = $region13
    $region12: #{tpu_custom_call.1} parent=1 // pred_region
      _
    $region13: #{tpu_custom_call.1} parent=1 // pred_fallthru
      _
    // Predicated region
    $region14: #{tpu_custom_call.1} parent=1 // pred_check
      _
    $region15: #{tpu_custom_call.1} parent=1 // pred_check_branch
      %18 = sbr.rel (0) target = $region17
    $region16: #{tpu_custom_call.1} parent=1 // pred_region
      _
    $region17: #{tpu_custom_call.1} parent=1 // pred_fallthru
      _
    // Predicated region
    $region18: #{tpu_custom_call.1} parent=1 // pred_check
      _
    $region19: #{tpu_custom_call.1} parent=1 // pred_check_branch
      %20 = sbr.rel (0) target = $region21
    $region20: #{tpu_custom_call.1} parent=1 // pred_region
      _
    $region21: #{tpu_custom_call.1} parent=1 // pred_fallthru
      _
    %p21 = scmp.eq.s32.totalorder 0, 0
    // Predicated region
    $region22: #{tpu_custom_call.1} parent=1 // pred_check
      %p22 = pneg %p21
    $region23: #{tpu_custom_call.1} parent=1 // pred_check_branch
      %24 = sbr.rel (%p22) target = $region25
    $region24: #{tpu_custom_call.1} parent=1 // pred_region
      %vm25 = vcmask 261120
      %26 = vst.msk [vmem:[#allocation2] sm:$0xff] %vm25, 0.0
      %27 = vst.msk [vmem:[#allocation2 + $0x8] sm:$0xff] %vm25, 0.0
    $region25: #{tpu_custom_call.1} parent=1 // pred_fallthru
      _
    %v28 = vld [vmem:[%s0] sm:$0xff]
    %v29 = vld [vmem:[%s0 + $0x8] sm:$0xff]
    %v30 = vld [vmem:[%s1] sm:$0xff]
    %v31 = vld [vmem:[%s1 + $0x8] sm:$0xff]
    %v32 = vld [vmem:[%s1 + $0x10] sm:$0xff]
    %v33 = vld [vmem:[%s1 + $0x18] sm:$0xff]
    %v34 = vld [vmem:[%s1 + $0x20] sm:$0xff]
    %v35 = vld [vmem:[%s1 + $0x28] sm:$0xff]
    %v36 = vld [vmem:[%s1 + $0x30] sm:$0xff]
    %v37 = vld [vmem:[%s1 + $0x38] sm:$0xff]
    %v38 = vld [vmem:[%s2] sm:$0x1]
    %v40 = vlaneseq
    %v41 = vshrl.u32 %v40, 7
    %v42 = vsub.s32 0, %v41
    %v43 = vrot.slane %v38, %v42
    %vm45 = vcmask 261120
    %v47 = vsel %vm45, %v28, 0
    %v50 = vsel %vm45, %v29, 0
    %v53 = vsel %vm45, %v30, 0
    %v56 = vsel %vm45, %v31, 0
    %v59 = vsel %vm45, %v32, 0
    %v62 = vsel %vm45, %v33, 0
    %v65 = vsel %vm45, %v34, 0
    %v68 = vsel %vm45, %v35, 0
    %v71 = vsel %vm45, %v36, 0
    %v74 = vsel %vm45, %v37, 0
    %76 = vmatprep.subr.mxu0 0.0
    %77 = vmatpush1.xpose.msra.mxu0 %v53
    %78 = vmatprep.subr.mxu0 0.0
    %79 = vmatpush1.xpose.msra.mxu0 %v56
    %80 = vmatprep.subr.mxu0 0.0
    %81 = vmatpush1.xpose.msra.mxu0 %v59
    %82 = vmatprep.subr.mxu0 0.0
    %83 = vmatpush1.xpose.msra.mxu0 %v62
    %84 = vmatprep.subr.mxu0 0.0
    %85 = vmatpush1.xpose.msra.mxu0 %v65
    %86 = vmatprep.subr.mxu0 0.0
    %87 = vmatpush1.xpose.msra.mxu0 %v68
    %88 = vmatprep.subr.mxu0 0.0
    %89 = vmatpush1.xpose.msra.mxu0 %v71
    %90 = vmatprep.subr.mxu0 0.0
    %91 = vmatpush1.xpose.msra.mxu0 %v74
    %92 = vmatprep.subr.mxu0 0.0
    %93 = vmatpush1.xpose.msra.mxu0 0.0
    %94 = vmatprep.subr.mxu0 0.0
    %95 = vmatpush1.xpose.msra.mxu0 0.0
    %96 = vmatprep.subr.mxu0 0.0
    %97 = vmatpush1.xpose.msra.mxu0 0.0
    %98 = vmatprep.subr.mxu0 0.0
    %99 = vmatpush1.xpose.msra.mxu0 0.0
    %100 = vmatprep.subr.mxu0 0.0
    %101 = vmatpush1.xpose.msra.mxu0 0.0
    %102 = vmatprep.subr.mxu0 0.0
    %103 = vmatpush1.xpose.msra.mxu0 0.0
    %104 = vmatprep.subr.mxu0 0.0
    %105 = vmatpush1.xpose.msra.mxu0 0.0
    %106 = vmatprep.subr.mxu0 0.0
    %107 = vmatpush1.xpose.msra.mxu0 0.0
    %108 = vmatprep.subr.mxu0 0.0
    %109 = vmatpush1.xpose.msra.mxu0 0.0
    %110 = vmatprep.subr.mxu0 0.0
    %111 = vmatpush1.xpose.msra.mxu0 0.0
    %112 = vmatprep.subr.mxu0 0.0
    %113 = vmatpush1.xpose.msra.mxu0 0.0
    %114 = vmatprep.subr.mxu0 0.0
    %115 = vmatpush1.xpose.msra.mxu0 0.0
    %116 = vmatprep.subr.mxu0 0.0
    %117 = vmatpush1.xpose.msra.mxu0 0.0
    %118 = vmatprep.subr.mxu0 0.0
    %119 = vmatpush1.xpose.msra.mxu0 0.0
    %120 = vmatprep.subr.mxu0 0.0
    %121 = vmatpush1.xpose.msra.mxu0 0.0
    %122 = vmatprep.subr.mxu0 0.0
    %123 = vmatpush1.xpose.msra.mxu0 0.0
    %124 = vmatprep.subr.mxu0 0.0
    %125 = vmatpush1.xpose.msra.mxu0 0.0
    %126 = vmatprep.subr.mxu0 0.0
    %127 = vmatpush1.xpose.msra.mxu0 0.0
    %128 = vmatprep.subr.mxu0 0.0
    %129 = vmatpush1.xpose.msra.mxu0 0.0
    %130 = vmatprep.subr.mxu0 0.0
    %131 = vmatpush1.xpose.msra.mxu0 0.0
    %132 = vmatprep.subr.mxu0 0.0
    %133 = vmatpush1.xpose.msra.mxu0 0.0
    %134 = vmatprep.subr.mxu0 0.0
    %135 = vmatpush1.xpose.msra.mxu0 0.0
    %136 = vmatprep.subr.mxu0 0.0
    %137 = vmatpush1.xpose.msra.mxu0 0.0
    %138 = vmatprep.subr.mxu0 0.0
    %139 = vmatpush1.xpose.msra.mxu0 0.0
    %140 = vmatprep.mubr.f32.mxu0 0.0
    %141 = vmatmul.mubr.f32.gmra.mrb[0].mxu0 %v47
    %v142 = vpop.f32.mrb[0].mxu0
    %v143 = vadd.f32 %v43, %v142
    %v144 = vpop.f32.mrb[0].mxu0
    %145 = vmatprep.mubr.f32.mxu0 0.0
    %146 = vmatmul.mubr.f32.gmra.mrb[0].mxu0 %v50
    %v147 = vpop.f32.mrb[0].mxu0
    %v148 = vadd.f32 %v43, %v147
    %v149 = vpop.f32.mrb[0].mxu0
    %150 = vdwg.mxu0
    %v151 = vmax.f32 %v143, 0.0
    %v152 = vmax.f32 %v148, 0.0
    %v153 = vld [vmem:[#allocation2] sm:$0xff]
    %v154 = vld [vmem:[#allocation2 + $0x8] sm:$0xff]
    %v155 = vld [vmem:[%s3] sm:$0xff]
    %v156 = vld [vmem:[%s3 + $0x8] sm:$0xff]
    %v157 = vld [vmem:[%s3 + $0x10] sm:$0xff]
    %v158 = vld [vmem:[%s3 + $0x18] sm:$0xff]
    %vm159 = vcmask 523264
    %v161 = vsel %vm159, %v151, 0
    %v164 = vsel %vm159, %v152, 0
    %v167 = vsel %vm159, %v155, 0
    %v170 = vsel %vm159, %v156, 0
    %v173 = vsel %vm159, %v157, 0
    %v176 = vsel %vm159, %v158, 0
    %178 = vmatprep.subr.mxu0 0.0
    %179 = vmatpush1.xpose.msra.mxu0 %v167
    %180 = vmatprep.subr.mxu0 0.0
    %181 = vmatpush1.xpose.msra.mxu0 %v170
    %182 = vmatprep.subr.mxu0 0.0
    %183 = vmatpush1.xpose.msra.mxu0 %v173
    %184 = vmatprep.subr.mxu0 0.0
    %185 = vmatpush1.xpose.msra.mxu0 %v176
    %186 = vmatprep.subr.mxu0 0.0
    %187 = vmatpush1.xpose.msra.mxu0 0.0
    %188 = vmatprep.subr.mxu0 0.0
    %189 = vmatpush1.xpose.msra.mxu0 0.0
    %190 = vmatprep.subr.mxu0 0.0
    %191 = vmatpush1.xpose.msra.mxu0 0.0
    %192 = vmatprep.subr.mxu0 0.0
    %193 = vmatpush1.xpose.msra.mxu0 0.0
    %194 = vmatprep.subr.mxu0 0.0
    %195 = vmatpush1.xpose.msra.mxu0 0.0
    %196 = vmatprep.subr.mxu0 0.0
    %197 = vmatpush1.xpose.msra.mxu0 0.0
    %198 = vmatprep.subr.mxu0 0.0
    %199 = vmatpush1.xpose.msra.mxu0 0.0
    %200 = vmatprep.subr.mxu0 0.0
    %201 = vmatpush1.xpose.msra.mxu0 0.0
    %202 = vmatprep.subr.mxu0 0.0
    %203 = vmatpush1.xpose.msra.mxu0 0.0
    %204 = vmatprep.subr.mxu0 0.0
    %205 = vmatpush1.xpose.msra.mxu0 0.0
    %206 = vmatprep.subr.mxu0 0.0
    %207 = vmatpush1.xpose.msra.mxu0 0.0
    %208 = vmatprep.subr.mxu0 0.0
    %209 = vmatpush1.xpose.msra.mxu0 0.0
    %210 = vmatprep.subr.mxu0 0.0
    %211 = vmatpush1.xpose.msra.mxu0 0.0
    %212 = vmatprep.subr.mxu0 0.0
    %213 = vmatpush1.xpose.msra.mxu0 0.0
    %214 = vmatprep.subr.mxu0 0.0
    %215 = vmatpush1.xpose.msra.mxu0 0.0
    %216 = vmatprep.subr.mxu0 0.0
    %217 = vmatpush1.xpose.msra.mxu0 0.0
    %218 = vmatprep.subr.mxu0 0.0
    %219 = vmatpush1.xpose.msra.mxu0 0.0
    %220 = vmatprep.subr.mxu0 0.0
    %221 = vmatpush1.xpose.msra.mxu0 0.0
    %222 = vmatprep.subr.mxu0 0.0
    %223 = vmatpush1.xpose.msra.mxu0 0.0
    %224 = vmatprep.subr.mxu0 0.0
    %225 = vmatpush1.xpose.msra.mxu0 0.0
    %226 = vmatprep.subr.mxu0 0.0
    %227 = vmatpush1.xpose.msra.mxu0 0.0
    %228 = vmatprep.subr.mxu0 0.0
    %229 = vmatpush1.xpose.msra.mxu0 0.0
    %230 = vmatprep.subr.mxu0 0.0
    %231 = vmatpush1.xpose.msra.mxu0 0.0
    %232 = vmatprep.subr.mxu0 0.0
    %233 = vmatpush1.xpose.msra.mxu0 0.0
    %234 = vmatprep.subr.mxu0 0.0
    %235 = vmatpush1.xpose.msra.mxu0 0.0
    %236 = vmatprep.subr.mxu0 0.0
    %237 = vmatpush1.xpose.msra.mxu0 0.0
    %238 = vmatprep.subr.mxu0 0.0
    %239 = vmatpush1.xpose.msra.mxu0 0.0
    %240 = vmatprep.subr.mxu0 0.0
    %241 = vmatpush1.xpose.msra.mxu0 0.0
    %242 = vmatprep.mubr.f32.mxu0 0.0
    %243 = vmatmul.mubr.f32.gmra.mrb[0].mxu0 %v161
    %v244 = vpop.f32.mrb[0].mxu0
    %v245 = vadd.f32 0.0, %v244
    %v246 = vpop.f32.mrb[0].mxu0
    %247 = vmatprep.mubr.f32.mxu0 0.0
    %248 = vmatmul.mubr.f32.gmra.mrb[0].mxu0 %v164
    %v249 = vpop.f32.mrb[0].mxu0
    %v250 = vadd.f32 0.0, %v249
    %v251 = vpop.f32.mrb[0].mxu0
    %252 = vdwg.mxu0
    %v253 = vadd.f32 %v153, %v245
    %v254 = vadd.f32 %v154, %v250
    %255 = vst.msk [vmem:[#allocation2] sm:$0xff] %vm45, %v253
    %256 = vst.msk [vmem:[#allocation2 + $0x8] sm:$0xff] %vm45, %v254
    // Predicated region
    $region26: #{tpu_custom_call.1} parent=1 // pred_check
      %p257 = pneg %p21
    $region27: #{tpu_custom_call.1} parent=1 // pred_check_branch
      %259 = sbr.rel (%p257) target = $region29
    $region28: #{tpu_custom_call.1} parent=1 // pred_region
      %v260 = vld [vmem:[#allocation2] sm:$0xff]
      %v261 = vld [vmem:[#allocation2 + $0x8] sm:$0xff]
      %v262 = vld [vmem:[%s4] sm:$0x1]
      %v264 = vlaneseq
      %v265 = vshrl.u32 %v264, 7
      %v266 = vsub.s32 0, %v265
      %v267 = vrot.slane %v262, %v266
      %v269 = vadd.f32 %v260, %v267
      %v270 = vadd.f32 %v261, %v267
      %271 = vst.msk [vmem:[#allocation3] sm:$0xff] %vm45, %v269
      %272 = vst.msk [vmem:[#allocation3 + $0x8] sm:$0xff] %vm45, %v270
    $region29: #{tpu_custom_call.1} parent=1 // pred_fallthru
      _
    // Predicated region
    $region30: #{tpu_custom_call.1} parent=1 // pred_check
      _
    $region31: #{tpu_custom_call.1} parent=1 // pred_check_branch
      %274 = sbr.rel (0) target = $region33
    $region32: #{tpu_custom_call.1} parent=1 // pred_region
      %s276 = ssub.s32 256, 256
      %277 = vsyncadd [#allocation4], %s276
      %s278 = sshll.u32 [#allocation3], 4
      %s279 = int_to_ptr.vmem [resolvable:$true] %s278
      %284 = dma.vmem_to_hbm [thread:$0]  %s279, 256, %s5, [#allocation4], 128, 128, 8
    $region33: #{tpu_custom_call.1} parent=1 // pred_fallthru
      _
    // Predicated region
    $region34: #{tpu_custom_call.1} parent=1 // pred_check
      _
    $region35: #{tpu_custom_call.1} parent=1 // pred_check_branch
      %286 = sbr.rel (0) target = $region37
    $region36: #{tpu_custom_call.1} parent=1 // pred_region
      %287 = dma.done [#allocation4], 256
    $region37: #{tpu_custom_call.1} parent=1 // pred_fallthru
      _
    %288 = vsyncpa [#allocation4], 1

</llo_original>
